<compile_context>
chip_gen: v5e
topology: v5e:2x2
jax: 0.10.0
libtpu: 0.0.40
codegen_flags: <defaults>
</compile_context>

<pallas_src>
import functools

import jax
import jax.numpy as jnp
from jax.experimental import pallas as pl
from jax.experimental.pallas import tpu as pltpu

CPAD = 8        # channel counts (4 / 6 / 8) zero-padded to 8 -> W*CPAD = 128
_EPS = 1e-5


# ------------------------------- fused kernel --------------------------------
def _resbl_kernel(x_ref, B_ref, v_ref, o_ref, *, cpad, H):
    # x_ref : (N*H, WC)      lane-packed input, WC = W*cpad
    # B_ref : (3, 3*WC, WC)  per-stage stacked band matrices (ky=0,1,2 row-blocks)
    # v_ref : (3, 3, WC)     per-stage [gamma, beta, conv-bias] in lane layout
    # o_ref : (N*H, WC)      lane-packed output
    NH, WC = x_ref.shape
    inv_count = 1.0 / (NH * (WC // cpad))            # 1 / (N*H*W)

    # Channel selector (per-channel reduce + broadcast across W replicas),
    # generated in-kernel: ~16 vregs of VPU work instead of a 64 KiB DMA.
    li = jax.lax.broadcasted_iota(jnp.int32, (WC, WC), 0) % cpad
    lj = jax.lax.broadcasted_iota(jnp.int32, (WC, WC), 1) % cpad
    chan_sel = (li == lj).astype(jnp.float32)

    # Per-image boundary masks for the +/-1 row shifts done with circular rolls.
    row = jax.lax.broadcasted_iota(jnp.int32, (NH, WC), 0) % H
    top_ok = row != 0          # first row of each image: nothing above
    bot_ok = row != (H - 1)    # last  row of each image: nothing below

    z = x_ref[...]
    for s in range(3):
        v = v_ref[s]                                  # (3, WC)
        gamma, beta, bias = v[0:1, :], v[1:2, :], v[2:3, :]

        # --- BatchNorm (training-mode batch stats), folded into scale/shift ---
        s1 = jnp.sum(z, axis=0, keepdims=True)        # (1, WC)
        s2 = jnp.sum(z * z, axis=0, keepdims=True)    # (1, WC)
        st = jnp.dot(jnp.concatenate([s1, s2], axis=0), chan_sel,
                     preferred_element_type=jnp.float32) * inv_count
        mean, ex2 = st[0:1, :], st[1:2, :]
        var = ex2 - mean * mean                       # biased variance
        scale = gamma * jax.lax.rsqrt(var + _EPS)     # per-channel, tiny rows
        shift = beta - mean * scale
        y = jnp.maximum(z * scale + shift, 0.0)       # BN + ReLU on the big tensor

        # --- 3x3 'same' conv as ONE K=3*WC matmul on [top | y | bot] ---
        top = jnp.where(top_ok, pltpu.roll(y, 1, axis=0), 0.0)       # y[i-1]
        bot = jnp.where(bot_ok, pltpu.roll(y, NH - 1, axis=0), 0.0)  # y[i+1]
        cat = jnp.concatenate([top, y, bot], axis=1)  # (NH, 3*WC)
        z = jnp.dot(cat, B_ref[s], preferred_element_type=jnp.float32) + bias

    o_ref[...] = z


# ------------------------------ parameter packing -----------------------------
def _band_matrices(w_oihw, width, cpad=CPAD):
    """Encode a 3x3 'same' conv as a stacked (3*width*cpad, width*cpad) matrix.
    Acting on the lane-packed (N*H, W*cpad) layout, each 128-row block performs
    the W-shift, W zero-padding and Cin->Cout mixing for one kernel row ky."""
    cout, cin, kh, kw = w_oihw.shape
    w_t = jnp.transpose(w_oihw.astype(jnp.float32), (2, 3, 1, 0))   # (kh,kw,cin,cout)
    w_t = jnp.pad(w_t, ((0, 0), (0, 0), (0, cpad - cin), (0, cpad - cout)))
    w_in = jnp.arange(width)[:, None]
    w_out = jnp.arange(width)[None, :]
    dx = w_in - w_out + (kw // 2)                                   # tap index
    valid = ((dx >= 0) & (dx < kw)).astype(jnp.float32)
    blocks = w_t[:, jnp.clip(dx, 0, kw - 1)]                        # (kh,W,W,cp,cp)
    blocks = blocks * valid[None, :, :, None, None]
    # B[ky, w_in*cp + ci, w_out*cp + co], stacked over ky along the rows.
    b = blocks.transpose(0, 1, 3, 2, 4).reshape(kh, width * cpad, width * cpad)
    return b.reshape(kh * width * cpad, width * cpad)


def _tile_lane(v, width, cpad=CPAD, fill=0.0):
    """Per-channel vector -> (width*cpad,) in the lane-packed column order."""
    v = v.astype(jnp.float32)
    pad = jnp.full((cpad - v.shape[0],), fill, jnp.float32)
    return jnp.tile(jnp.concatenate([v, pad]), width)


def pack_resbl_params(params, width):
    """One-time packing of all weights (hoisted out of the per-call path)."""
    B = jnp.stack([_band_matrices(params["w1"], width),
                   _band_matrices(params["w2"], width),
                   _band_matrices(params["w3"], width)])            # (3, 3*WC, WC)

    def vec(g, be, b):
        return jnp.stack([_tile_lane(g, width, fill=1.0),           # BN gamma
                          _tile_lane(be, width),                    # BN beta
                          _tile_lane(b, width)])                    # conv bias

    V = jnp.stack([vec(params["g1"], params["be1"], params["b1"]),
                   vec(params["g2"], params["be2"], params["b2"]),
                   vec(params["g3"], params["be3"], params["b3"])])  # (3, 3, WC)
    return B, V


# --------------------------------- forward ------------------------------------
def resbl_forward(x_nchw, B, V, *, cout):
    """ResBl forward. Input/output are NCHW (PyTorch convention)."""
    N, Cin, H, W = x_nchw.shape
    assert Cin <= CPAD and cout <= CPAD
    WC = W * CPAD

    # Lane-pack the input: NCHW -> (N*H, W*CPAD), channels zero-padded to CPAD.
    x = jnp.transpose(x_nchw.astype(jnp.float32), (0, 2, 3, 1))     # NHWC
    x = jnp.pad(x, ((0, 0), (0, 0), (0, 0), (0, CPAD - Cin)))
    x2 = x.reshape(N * H, WC)

    vmem = pl.BlockSpec(memory_space=pltpu.MemorySpace.VMEM)
    out2d = pl.pallas_call(
        functools.partial(_resbl_kernel, cpad=CPAD, H=H),
        out_shape=jax.ShapeDtypeStruct((N * H, WC), jnp.float32),
        in_specs=[vmem, vmem, vmem],
        out_specs=vmem,
    )(x2, B, V)

    out = out2d.reshape(N, H, W, CPAD)[..., :cout]
    return jnp.transpose(out, (0, 3, 1, 2))                          # -> NCHW


# ----------------------------- pure-JAX reference -----------------------------
def _bn_ref(x, gamma, beta):
    mean = x.mean(axis=(0, 2, 3), keepdims=True)
    var = ((x - mean) ** 2).mean(axis=(0, 2, 3), keepdims=True)
    xn = (x - mean) / jnp.sqrt(var + _EPS)
    return xn * gamma.reshape(1, -1, 1, 1) + beta.reshape(1, -1, 1, 1)


def _conv_ref(x, w, b):
    y = jax.lax.conv_general_dilated(
        x, w, window_strides=(1, 1), padding="SAME",
        dimension_numbers=("NCHW", "OIHW", "NCHW"))
    return y + b.reshape(1, -1, 1, 1)


def resbl_ref(x, p):
    o = _conv_ref(jax.nn.relu(_bn_ref(x, p["g1"], p["be1"])), p["w1"], p["b1"])
    o = _conv_ref(jax.nn.relu(_bn_ref(o, p["g2"], p["be2"])), p["w2"], p["b2"])
    o = _conv_ref(jax.nn.relu(_bn_ref(o, p["g3"], p["be3"])), p["w3"], p["b3"])
    return o


# ----------------------------------- main -------------------------------------
if __name__ == "__main__":
    in_size, out_size = 4, 8
    mid = (in_size + out_size) // 2          # 6
    N, H, W = 2, 16, 16

    key = jax.random.PRNGKey(0)
    ks = jax.random.split(key, 7)
    x = jax.random.normal(ks[0], (N, in_size, H, W), jnp.float32)

    params = {
        # conv1: in_size -> mid
        "w1": jax.random.normal(ks[1], (mid, in_size, 3, 3), jnp.float32) * 0.1,
        "b1": jax.random.normal(ks[2], (mid,), jnp.float32) * 0.1,
        # conv2: mid -> mid
        "w2": jax.random.normal(ks[3], (mid, mid, 3, 3), jnp.float32) * 0.1,
        "b2": jax.random.normal(ks[4], (mid,), jnp.float32) * 0.1,
        # conv3: mid -> out_size
        "w3": jax.random.normal(ks[5], (out_size, mid, 3, 3), jnp.float32) * 0.1,
        "b3": jax.random.normal(ks[6], (out_size,), jnp.float32) * 0.1,
        # BatchNorm affine params at PyTorch init (weight=1, bias=0)
        "g1": jnp.ones((in_size,), jnp.float32), "be1": jnp.zeros((in_size,), jnp.float32),
        "g2": jnp.ones((mid,), jnp.float32),     "be2": jnp.zeros((mid,), jnp.float32),
        "g3": jnp.ones((mid,), jnp.float32),     "be3": jnp.zeros((mid,), jnp.float32),
    }

    # One-time parameter packing (not in the per-call path).
    B, V = pack_resbl_params(params, W)
    B, V = jax.block_until_ready((B, V))

    fwd = jax.jit(functools.partial(resbl_forward, cout=out_size))
    out = jax.block_until_ready(fwd(x, B, V))
    ref = jax.block_until_ready(resbl_ref(x, params))

    assert out.shape == (N, out_size, H, W), out.shape
    max_err = float(jnp.max(jnp.abs(out - ref)))
    assert jnp.allclose(out, ref, atol=2e-4, rtol=2e-4), max_err

    # TODO(synk): nn.BatchNorm2d running_mean/running_var buffer updates are a
    # training-time side effect and are intentionally not materialized here.

    print("KERNEL_OK")
</pallas_src>

<mosaic_0001>
module attributes {stable_mosaic.version = 11 : i64} {
  func.func @_resbl_kernel(%arg0: memref<32x128xf32, #tpu.memory_space<vmem>>, %arg1: memref<3x384x128xf32, #tpu.memory_space<vmem>>, %arg2: memref<3x3x128xf32, #tpu.memory_space<vmem>>, %arg3: memref<32x128xf32, #tpu.memory_space<vmem>>) attributes {dimension_semantics = [], scalar_prefetch = 0 : i64, scratch_operands = 0 : i64, tpu.core_type = #tpu.core_type<tc>} {
    %0 = tpu.iota {dimensions = array<i32: 0>} : vector<128x128xi32>
    %c8_i32 = arith.constant 8 : i32
    %c0_i32 = arith.constant 0 : i32
    %1 = arith.cmpi eq, %c8_i32, %c0_i32 : i32
    %c1_i32 = arith.constant 1 : i32
    %2 = arith.select %1, %c1_i32, %c8_i32 : i32
    %3 = vector.broadcast %2 : i32 to vector<128x128xi32>
    %4 = arith.remsi %0, %3 : vector<128x128xi32>
    %c0_i32_0 = arith.constant 0 : i32
    %5 = vector.broadcast %c0_i32_0 : i32 to vector<128x128xi32>
    %6 = arith.cmpi ne, %4, %5 : vector<128x128xi32>
    %c0_i32_1 = arith.constant 0 : i32
    %7 = vector.broadcast %c0_i32_1 : i32 to vector<128x128xi32>
    %8 = arith.cmpi slt, %4, %7 : vector<128x128xi32>
    %c0_i32_2 = arith.constant 0 : i32
    %9 = arith.cmpi slt, %2, %c0_i32_2 : i32
    %10 = vector.broadcast %9 : i1 to vector<128x128xi1>
    %11 = vector.broadcast %10 : vector<128x128xi1> to vector<128x128xi1>
    %12 = arith.xori %8, %11 : vector<128x128xi1>
    %13 = arith.andi %12, %6 : vector<128x128xi1>
    %14 = vector.broadcast %2 : i32 to vector<128x128xi32>
    %15 = arith.addi %4, %14 : vector<128x128xi32>
    %16 = arith.select %13, %15, %4 : vector<128x128xi1>, vector<128x128xi32>
    %17 = tpu.iota {dimensions = array<i32: 1>} : vector<128x128xi32>
    %c8_i32_3 = arith.constant 8 : i32
    %c0_i32_4 = arith.constant 0 : i32
    %18 = arith.cmpi eq, %c8_i32_3, %c0_i32_4 : i32
    %c1_i32_5 = arith.constant 1 : i32
    %19 = arith.select %18, %c1_i32_5, %c8_i32_3 : i32
    %20 = vector.broadcast %19 : i32 to vector<128x128xi32>
    %21 = arith.remsi %17, %20 : vector<128x128xi32>
    %c0_i32_6 = arith.constant 0 : i32
    %22 = vector.broadcast %c0_i32_6 : i32 to vector<128x128xi32>
    %23 = arith.cmpi ne, %21, %22 : vector<128x128xi32>
    %c0_i32_7 = arith.constant 0 : i32
    %24 = vector.broadcast %c0_i32_7 : i32 to vector<128x128xi32>
    %25 = arith.cmpi slt, %21, %24 : vector<128x128xi32>
    %c0_i32_8 = arith.constant 0 : i32
    %26 = arith.cmpi slt, %19, %c0_i32_8 : i32
    %27 = vector.broadcast %26 : i1 to vector<128x128xi1>
    %28 = vector.broadcast %27 : vector<128x128xi1> to vector<128x128xi1>
    %29 = arith.xori %25, %28 : vector<128x128xi1>
    %30 = arith.andi %29, %23 : vector<128x128xi1>
    %31 = vector.broadcast %19 : i32 to vector<128x128xi32>
    %32 = arith.addi %21, %31 : vector<128x128xi32>
    %33 = arith.select %30, %32, %21 : vector<128x128xi1>, vector<128x128xi32>
    %34 = arith.cmpi eq, %16, %33 : vector<128x128xi32>
    %35 = arith.extui %34 : vector<128x128xi1> to vector<128x128xi32>
    %36 = arith.sitofp %35 : vector<128x128xi32> to vector<128x128xf32>
    %37 = tpu.iota {dimensions = array<i32: 0>} : vector<32x128xi32>
    %c16_i32 = arith.constant 16 : i32
    %c0_i32_9 = arith.constant 0 : i32
    %38 = arith.cmpi eq, %c16_i32, %c0_i32_9 : i32
    %c1_i32_10 = arith.constant 1 : i32
    %39 = arith.select %38, %c1_i32_10, %c16_i32 : i32
    %40 = vector.broadcast %39 : i32 to vector<32x128xi32>
    %41 = arith.remsi %37, %40 : vector<32x128xi32>
    %c0_i32_11 = arith.constant 0 : i32
    %42 = vector.broadcast %c0_i32_11 : i32 to vector<32x128xi32>
    %43 = arith.cmpi ne, %41, %42 : vector<32x128xi32>
    %c0_i32_12 = arith.constant 0 : i32
    %44 = vector.broadcast %c0_i32_12 : i32 to vector<32x128xi32>
    %45 = arith.cmpi slt, %41, %44 : vector<32x128xi32>
    %c0_i32_13 = arith.constant 0 : i32
    %46 = arith.cmpi slt, %39, %c0_i32_13 : i32
    %47 = vector.broadcast %46 : i1 to vector<32x128xi1>
    %48 = vector.broadcast %47 : vector<32x128xi1> to vector<32x128xi1>
    %49 = arith.xori %45, %48 : vector<32x128xi1>
    %50 = arith.andi %49, %43 : vector<32x128xi1>
    %51 = vector.broadcast %39 : i32 to vector<32x128xi32>
    %52 = arith.addi %41, %51 : vector<32x128xi32>
    %53 = arith.select %50, %52, %41 : vector<32x128xi1>, vector<32x128xi32>
    %c0_i32_14 = arith.constant 0 : i32
    %54 = vector.broadcast %c0_i32_14 : i32 to vector<32x128xi32>
    %55 = arith.cmpi ne, %53, %54 : vector<32x128xi32>
    %c15_i32 = arith.constant 15 : i32
    %56 = vector.broadcast %c15_i32 : i32 to vector<32x128xi32>
    %57 = arith.cmpi ne, %53, %56 : vector<32x128xi32>
    %c0 = arith.constant 0 : index
    %c0_15 = arith.constant 0 : index
    %58 = vector.load %arg0[%c0, %c0_15] : memref<32x128xf32, #tpu.memory_space<vmem>>, vector<32x128xf32>
    %c0_16 = arith.constant 0 : index
    %c0_17 = arith.constant 0 : index
    %c0_18 = arith.constant 0 : index
    %59 = vector.load %arg2[%c0_16, %c0_17, %c0_18] : memref<3x3x128xf32, #tpu.memory_space<vmem>>, vector<1x3x128xf32>
    %60 = vector.shape_cast %59 : vector<1x3x128xf32> to vector<3x128xf32>
    %61 = vector.extract_strided_slice %60 {offsets = [0, 0], sizes = [1, 128], strides = [1, 1]} : vector<3x128xf32> to vector<1x128xf32>
    %62 = vector.extract_strided_slice %60 {offsets = [1, 0], sizes = [1, 128], strides = [1, 1]} : vector<3x128xf32> to vector<1x128xf32>
    %63 = vector.extract_strided_slice %60 {offsets = [2, 0], sizes = [1, 128], strides = [1, 1]} : vector<3x128xf32> to vector<1x128xf32>
    %cst = arith.constant dense<0.000000e+00> : vector<128xf32>
    %64 = vector.multi_reduction <add>, %58, %cst [0] : vector<32x128xf32> to vector<128xf32>
    %65 = vector.shape_cast %64 : vector<128xf32> to vector<1x128xf32>
    %66 = arith.mulf %58, %58 : vector<32x128xf32>
    %cst_19 = arith.constant dense<0.000000e+00> : vector<128xf32>
    %67 = vector.multi_reduction <add>, %66, %cst_19 [0] : vector<32x128xf32> to vector<128xf32>
    %68 = vector.shape_cast %67 : vector<128xf32> to vector<1x128xf32>
    %69 = tpu.concatenate %65, %68 in 0 : vector<1x128xf32>, vector<1x128xf32> -> vector<2x128xf32>
    %cst_20 = arith.constant dense<0.000000e+00> : vector<2x128xf32>
    %70 = tpu.matmul %69, %36, %cst_20 {dimension_numbers = #tpu.dot_dimension_numbers<[1], [0], [0], [1], [0, 0, 1, 1], [], []>} : vector<2x128xf32>, vector<128x128xf32>, vector<2x128xf32> -> vector<2x128xf32>
    %cst_21 = arith.constant 0.001953125 : f32
    %71 = vector.broadcast %cst_21 : f32 to vector<2x128xf32>
    %72 = arith.mulf %70, %71 : vector<2x128xf32>
    %73 = vector.extract_strided_slice %72 {offsets = [0, 0], sizes = [1, 128], strides = [1, 1]} : vector<2x128xf32> to vector<1x128xf32>
    %74 = vector.extract_strided_slice %72 {offsets = [1, 0], sizes = [1, 128], strides = [1, 1]} : vector<2x128xf32> to vector<1x128xf32>
    %75 = arith.mulf %73, %73 : vector<1x128xf32>
    %76 = arith.subf %74, %75 : vector<1x128xf32>
    %cst_22 = arith.constant 9.99999974E-6 : f32
    %77 = vector.broadcast %cst_22 : f32 to vector<1x128xf32>
    %78 = arith.addf %76, %77 : vector<1x128xf32>
    %79 = math.rsqrt %78 : vector<1x128xf32>
    %80 = arith.mulf %61, %79 : vector<1x128xf32>
    %81 = arith.mulf %73, %80 : vector<1x128xf32>
    %82 = arith.subf %62, %81 : vector<1x128xf32>
    %83 = vector.broadcast %80 : vector<1x128xf32> to vector<32x128xf32>
    %84 = arith.mulf %58, %83 : vector<32x128xf32>
    %85 = vector.broadcast %82 : vector<1x128xf32> to vector<32x128xf32>
    %86 = arith.addf %84, %85 : vector<32x128xf32>
    %cst_23 = arith.constant 0.000000e+00 : f32
    %87 = vector.broadcast %cst_23 : f32 to vector<32x128xf32>
    %88 = arith.maximumf %86, %87 : vector<32x128xf32>
    %c1_i32_24 = arith.constant 1 : i32
    %89 = tpu.dynamic_rotate %88 by %c1_i32_24 dim 0 : vector<32x128xf32>, i32 -> vector<32x128xf32>
    %cst_25 = arith.constant 0.000000e+00 : f32
    %90 = vector.broadcast %cst_25 : f32 to vector<32x128xf32>
    %91 = arith.select %55, %89, %90 : vector<32x128xi1>, vector<32x128xf32>
    %c31_i32 = arith.constant 31 : i32
    %92 = tpu.dynamic_rotate %88 by %c31_i32 dim 0 : vector<32x128xf32>, i32 -> vector<32x128xf32>
    %cst_26 = arith.constant 0.000000e+00 : f32
    %93 = vector.broadcast %cst_26 : f32 to vector<32x128xf32>
    %94 = arith.select %57, %92, %93 : vector<32x128xi1>, vector<32x128xf32>
    %95 = tpu.concatenate %91, %88, %94 in 1 : vector<32x128xf32>, vector<32x128xf32>, vector<32x128xf32> -> vector<32x384xf32>
    %c0_27 = arith.constant 0 : index
    %c0_28 = arith.constant 0 : index
    %c0_29 = arith.constant 0 : index
    %96 = vector.load %arg1[%c0_27, %c0_28, %c0_29] : memref<3x384x128xf32, #tpu.memory_space<vmem>>, vector<1x384x128xf32>
    %97 = vector.shape_cast %96 : vector<1x384x128xf32> to vector<384x128xf32>
    %cst_30 = arith.constant dense<0.000000e+00> : vector<32x128xf32>
    %98 = tpu.matmul %95, %97, %cst_30 {dimension_numbers = #tpu.dot_dimension_numbers<[1], [0], [0], [1], [0, 0, 1, 1], [], []>} : vector<32x384xf32>, vector<384x128xf32>, vector<32x128xf32> -> vector<32x128xf32>
    %99 = vector.broadcast %63 : vector<1x128xf32> to vector<32x128xf32>
    %100 = arith.addf %98, %99 : vector<32x128xf32>
    %c1 = arith.constant 1 : index
    %c0_31 = arith.constant 0 : index
    %c0_32 = arith.constant 0 : index
    %101 = vector.load %arg2[%c1, %c0_31, %c0_32] : memref<3x3x128xf32, #tpu.memory_space<vmem>>, vector<1x3x128xf32>
    %102 = vector.shape_cast %101 : vector<1x3x128xf32> to vector<3x128xf32>
    %103 = vector.extract_strided_slice %102 {offsets = [0, 0], sizes = [1, 128], strides = [1, 1]} : vector<3x128xf32> to vector<1x128xf32>
    %104 = vector.extract_strided_slice %102 {offsets = [1, 0], sizes = [1, 128], strides = [1, 1]} : vector<3x128xf32> to vector<1x128xf32>
    %105 = vector.extract_strided_slice %102 {offsets = [2, 0], sizes = [1, 128], strides = [1, 1]} : vector<3x128xf32> to vector<1x128xf32>
    %cst_33 = arith.constant dense<0.000000e+00> : vector<128xf32>
    %106 = vector.multi_reduction <add>, %100, %cst_33 [0] : vector<32x128xf32> to vector<128xf32>
    %107 = vector.shape_cast %106 : vector<128xf32> to vector<1x128xf32>
    %108 = arith.mulf %100, %100 : vector<32x128xf32>
    %cst_34 = arith.constant dense<0.000000e+00> : vector<128xf32>
    %109 = vector.multi_reduction <add>, %108, %cst_34 [0] : vector<32x128xf32> to vector<128xf32>
    %110 = vector.shape_cast %109 : vector<128xf32> to vector<1x128xf32>
    %111 = tpu.concatenate %107, %110 in 0 : vector<1x128xf32>, vector<1x128xf32> -> vector<2x128xf32>
    %cst_35 = arith.constant dense<0.000000e+00> : vector<2x128xf32>
    %112 = tpu.matmul %111, %36, %cst_35 {dimension_numbers = #tpu.dot_dimension_numbers<[1], [0], [0], [1], [0, 0, 1, 1], [], []>} : vector<2x128xf32>, vector<128x128xf32>, vector<2x128xf32> -> vector<2x128xf32>
    %cst_36 = arith.constant 0.001953125 : f32
    %113 = vector.broadcast %cst_36 : f32 to vector<2x128xf32>
    %114 = arith.mulf %112, %113 : vector<2x128xf32>
    %115 = vector.extract_strided_slice %114 {offsets = [0, 0], sizes = [1, 128], strides = [1, 1]} : vector<2x128xf32> to vector<1x128xf32>
    %116 = vector.extract_strided_slice %114 {offsets = [1, 0], sizes = [1, 128], strides = [1, 1]} : vector<2x128xf32> to vector<1x128xf32>
    %117 = arith.mulf %115, %115 : vector<1x128xf32>
    %118 = arith.subf %116, %117 : vector<1x128xf32>
    %cst_37 = arith.constant 9.99999974E-6 : f32
    %119 = vector.broadcast %cst_37 : f32 to vector<1x128xf32>
    %120 = arith.addf %118, %119 : vector<1x128xf32>
    %121 = math.rsqrt %120 : vector<1x128xf32>
    %122 = arith.mulf %103, %121 : vector<1x128xf32>
    %123 = arith.mulf %115, %122 : vector<1x128xf32>
    %124 = arith.subf %104, %123 : vector<1x128xf32>
    %125 = vector.broadcast %122 : vector<1x128xf32> to vector<32x128xf32>
    %126 = arith.mulf %100, %125 : vector<32x128xf32>
    %127 = vector.broadcast %124 : vector<1x128xf32> to vector<32x128xf32>
    %128 = arith.addf %126, %127 : vector<32x128xf32>
    %cst_38 = arith.constant 0.000000e+00 : f32
    %129 = vector.broadcast %cst_38 : f32 to vector<32x128xf32>
    %130 = arith.maximumf %128, %129 : vector<32x128xf32>
    %c1_i32_39 = arith.constant 1 : i32
    %131 = tpu.dynamic_rotate %130 by %c1_i32_39 dim 0 : vector<32x128xf32>, i32 -> vector<32x128xf32>
    %cst_40 = arith.constant 0.000000e+00 : f32
    %132 = vector.broadcast %cst_40 : f32 to vector<32x128xf32>
    %133 = arith.select %55, %131, %132 : vector<32x128xi1>, vector<32x128xf32>
    %c31_i32_41 = arith.constant 31 : i32
    %134 = tpu.dynamic_rotate %130 by %c31_i32_41 dim 0 : vector<32x128xf32>, i32 -> vector<32x128xf32>
    %cst_42 = arith.constant 0.000000e+00 : f32
    %135 = vector.broadcast %cst_42 : f32 to vector<32x128xf32>
    %136 = arith.select %57, %134, %135 : vector<32x128xi1>, vector<32x128xf32>
    %137 = tpu.concatenate %133, %130, %136 in 1 : vector<32x128xf32>, vector<32x128xf32>, vector<32x128xf32> -> vector<32x384xf32>
    %c1_43 = arith.constant 1 : index
    %c0_44 = arith.constant 0 : index
    %c0_45 = arith.constant 0 : index
    %138 = vector.load %arg1[%c1_43, %c0_44, %c0_45] : memref<3x384x128xf32, #tpu.memory_space<vmem>>, vector<1x384x128xf32>
    %139 = vector.shape_cast %138 : vector<1x384x128xf32> to vector<384x128xf32>
    %cst_46 = arith.constant dense<0.000000e+00> : vector<32x128xf32>
    %140 = tpu.matmul %137, %139, %cst_46 {dimension_numbers = #tpu.dot_dimension_numbers<[1], [0], [0], [1], [0, 0, 1, 1], [], []>} : vector<32x384xf32>, vector<384x128xf32>, vector<32x128xf32> -> vector<32x128xf32>
    %141 = vector.broadcast %105 : vector<1x128xf32> to vector<32x128xf32>
    %142 = arith.addf %140, %141 : vector<32x128xf32>
    %c2 = arith.constant 2 : index
    %c0_47 = arith.constant 0 : index
    %c0_48 = arith.constant 0 : index
    %143 = vector.load %arg2[%c2, %c0_47, %c0_48] : memref<3x3x128xf32, #tpu.memory_space<vmem>>, vector<1x3x128xf32>
    %144 = vector.shape_cast %143 : vector<1x3x128xf32> to vector<3x128xf32>
    %145 = vector.extract_strided_slice %144 {offsets = [0, 0], sizes = [1, 128], strides = [1, 1]} : vector<3x128xf32> to vector<1x128xf32>
    %146 = vector.extract_strided_slice %144 {offsets = [1, 0], sizes = [1, 128], strides = [1, 1]} : vector<3x128xf32> to vector<1x128xf32>
    %147 = vector.extract_strided_slice %144 {offsets = [2, 0], sizes = [1, 128], strides = [1, 1]} : vector<3x128xf32> to vector<1x128xf32>
    %cst_49 = arith.constant dense<0.000000e+00> : vector<128xf32>
    %148 = vector.multi_reduction <add>, %142, %cst_49 [0] : vector<32x128xf32> to vector<128xf32>
    %149 = vector.shape_cast %148 : vector<128xf32> to vector<1x128xf32>
    %150 = arith.mulf %142, %142 : vector<32x128xf32>
    %cst_50 = arith.constant dense<0.000000e+00> : vector<128xf32>
    %151 = vector.multi_reduction <add>, %150, %cst_50 [0] : vector<32x128xf32> to vector<128xf32>
    %152 = vector.shape_cast %151 : vector<128xf32> to vector<1x128xf32>
    %153 = tpu.concatenate %149, %152 in 0 : vector<1x128xf32>, vector<1x128xf32> -> vector<2x128xf32>
    %cst_51 = arith.constant dense<0.000000e+00> : vector<2x128xf32>
    %154 = tpu.matmul %153, %36, %cst_51 {dimension_numbers = #tpu.dot_dimension_numbers<[1], [0], [0], [1], [0, 0, 1, 1], [], []>} : vector<2x128xf32>, vector<128x128xf32>, vector<2x128xf32> -> vector<2x128xf32>
    %cst_52 = arith.constant 0.001953125 : f32
    %155 = vector.broadcast %cst_52 : f32 to vector<2x128xf32>
    %156 = arith.mulf %154, %155 : vector<2x128xf32>
    %157 = vector.extract_strided_slice %156 {offsets = [0, 0], sizes = [1, 128], strides = [1, 1]} : vector<2x128xf32> to vector<1x128xf32>
    %158 = vector.extract_strided_slice %156 {offsets = [1, 0], sizes = [1, 128], strides = [1, 1]} : vector<2x128xf32> to vector<1x128xf32>
    %159 = arith.mulf %157, %157 : vector<1x128xf32>
    %160 = arith.subf %158, %159 : vector<1x128xf32>
    %cst_53 = arith.constant 9.99999974E-6 : f32
    %161 = vector.broadcast %cst_53 : f32 to vector<1x128xf32>
    %162 = arith.addf %160, %161 : vector<1x128xf32>
    %163 = math.rsqrt %162 : vector<1x128xf32>
    %164 = arith.mulf %145, %163 : vector<1x128xf32>
    %165 = arith.mulf %157, %164 : vector<1x128xf32>
    %166 = arith.subf %146, %165 : vector<1x128xf32>
    %167 = vector.broadcast %164 : vector<1x128xf32> to vector<32x128xf32>
    %168 = arith.mulf %142, %167 : vector<32x128xf32>
    %169 = vector.broadcast %166 : vector<1x128xf32> to vector<32x128xf32>
    %170 = arith.addf %168, %169 : vector<32x128xf32>
    %cst_54 = arith.constant 0.000000e+00 : f32
    %171 = vector.broadcast %cst_54 : f32 to vector<32x128xf32>
    %172 = arith.maximumf %170, %171 : vector<32x128xf32>
    %c1_i32_55 = arith.constant 1 : i32
    %173 = tpu.dynamic_rotate %172 by %c1_i32_55 dim 0 : vector<32x128xf32>, i32 -> vector<32x128xf32>
    %cst_56 = arith.constant 0.000000e+00 : f32
    %174 = vector.broadcast %cst_56 : f32 to vector<32x128xf32>
    %175 = arith.select %55, %173, %174 : vector<32x128xi1>, vector<32x128xf32>
    %c31_i32_57 = arith.constant 31 : i32
    %176 = tpu.dynamic_rotate %172 by %c31_i32_57 dim 0 : vector<32x128xf32>, i32 -> vector<32x128xf32>
    %cst_58 = arith.constant 0.000000e+00 : f32
    %177 = vector.broadcast %cst_58 : f32 to vector<32x128xf32>
    %178 = arith.select %57, %176, %177 : vector<32x128xi1>, vector<32x128xf32>
    %179 = tpu.concatenate %175, %172, %178 in 1 : vector<32x128xf32>, vector<32x128xf32>, vector<32x128xf32> -> vector<32x384xf32>
    %c2_59 = arith.constant 2 : index
    %c0_60 = arith.constant 0 : index
    %c0_61 = arith.constant 0 : index
    %180 = vector.load %arg1[%c2_59, %c0_60, %c0_61] : memref<3x384x128xf32, #tpu.memory_space<vmem>>, vector<1x384x128xf32>
    %181 = vector.shape_cast %180 : vector<1x384x128xf32> to vector<384x128xf32>
    %cst_62 = arith.constant dense<0.000000e+00> : vector<32x128xf32>
    %182 = tpu.matmul %179, %181, %cst_62 {dimension_numbers = #tpu.dot_dimension_numbers<[1], [0], [0], [1], [0, 0, 1, 1], [], []>} : vector<32x384xf32>, vector<384x128xf32>, vector<32x128xf32> -> vector<32x128xf32>
    %183 = vector.broadcast %147 : vector<1x128xf32> to vector<32x128xf32>
    %184 = arith.addf %182, %183 : vector<32x128xf32>
    %c0_63 = arith.constant 0 : index
    %c0_64 = arith.constant 0 : index
    %185 = vector.load %arg3[%c0_63, %c0_64] : memref<32x128xf32, #tpu.memory_space<vmem>>, vector<32x128xf32>
    tpu.vector_store %arg3[%c0_63, %c0_64], %184 {strides = array<i32>} : memref<32x128xf32, #tpu.memory_space<vmem>>, vector<32x128xf32>,
    return
  }
}

</mosaic_0001>

<llo_original>
// kernel: resbl_forward.1
$region0: #{resbl_forward.1}
  #allocation0 [shape = 'u32[]', space=smem, size = 0x4, offset = 0x4, fixed_abs, tag = 'smem constant byte address 0x4 - core index']
  #allocation1 [shape = 'u32[72,128]{1,0:T(1,128)}', space=vmem, size = 0x9000, scoped, tag = 'internal scratch']
  %s0 = inlined_call_operand.vmem [shape: f32[32,128], index: 0, kind: input, shape index: {}]
  %s1 = inlined_call_operand.vmem [shape: f32[3,384,128], index: 1, kind: input, shape index: {}]
  %s2 = inlined_call_operand.vmem [shape: f32[3,3,128], index: 2, kind: input, shape index: {}]
  %s3 = inlined_call_operand.vmem [shape: f32[32,128], index: 3, kind: output, shape index: {}]
  %s4 = sld [smem:[#allocation0]]
  $region22: #{resbl_forward.1} parent=0
    _
  %s6 = ssub.s32 1, %s4
  %s7 = scalar_select 0, %s6, %s4
  // Predicated region
  $region2: #{resbl_forward.1} parent=0 // pred_check
    _
  $region3: #{resbl_forward.1} parent=0 // pred_check_branch
    %9 = sbr.rel (0) target = $region5
  $region4: #{resbl_forward.1} parent=0 // pred_region
    _
  $region5: #{resbl_forward.1} parent=0 // pred_fallthru
    _
  // Predicated region
  $region6: #{resbl_forward.1} parent=0 // pred_check
    _
  $region7: #{resbl_forward.1} parent=0 // pred_check_branch
    %11 = sbr.rel (0) target = $region9
  $region8: #{resbl_forward.1} parent=0 // pred_region
    _
  $region9: #{resbl_forward.1} parent=0 // pred_fallthru
    _
  // Predicated region
  $region10: #{resbl_forward.1} parent=0 // pred_check
    _
  $region11: #{resbl_forward.1} parent=0 // pred_check_branch
    %13 = sbr.rel (0) target = $region13
  $region12: #{resbl_forward.1} parent=0 // pred_region
    _
  $region13: #{resbl_forward.1} parent=0 // pred_fallthru
    _
  %v14 = vlaneseq
  %v15 = vshrl.u32 %v14, 7
  %v16 = vadd.s32 %v15, 8
  %v17 = vadd.s32 %v15, 16
  %v18 = vadd.s32 %v15, 24
  %v19 = vadd.s32 %v15, 32
  %v20 = vadd.s32 %v15, 40
  %v21 = vadd.s32 %v15, 48
  %v22 = vadd.s32 %v15, 56
  %v23 = vadd.s32 %v15, 64
  %v24 = vadd.s32 %v15, 72
  %v25 = vadd.s32 %v15, 80
  %v26 = vadd.s32 %v15, 88
  %v27 = vadd.s32 %v15, 96
  %v28 = vadd.s32 %v15, 104
  %v29 = vadd.s32 %v15, 112
  %v30 = vadd.s32 %v15, 120
  %vm31 = vcmp.lt.s32.totalorder %v15, 0
  %v32 = vsub.s32 0, %v15
  %v33 = vsel %vm31, %v32, %v15
  %v34 = vshrl.u32 %v33, 3
  %v35 = vand.u32 %v33, 7
  %v36 = vsub.s32 0, %v35
  %v37 = vsel %vm31, %v36, %v35
  %vm38 = vcmp.lt.s32.totalorder %v16, 0
  %v39 = vsub.s32 0, %v16
  %v40 = vsel %vm38, %v39, %v16
  %v41 = vshrl.u32 %v40, 3
  %v42 = vand.u32 %v40, 7
  %v43 = vsub.s32 0, %v42
  %v44 = vsel %vm38, %v43, %v42
  %vm45 = vcmp.lt.s32.totalorder %v17, 0
  %v46 = vsub.s32 0, %v17
  %v47 = vsel %vm45, %v46, %v17
  %v48 = vshrl.u32 %v47, 3
  %v49 = vand.u32 %v47, 7
  %v50 = vsub.s32 0, %v49
  %v51 = vsel %vm45, %v50, %v49
  %vm52 = vcmp.lt.s32.totalorder %v18, 0
  %v53 = vsub.s32 0, %v18
  %v54 = vsel %vm52, %v53, %v18
  %v55 = vshrl.u32 %v54, 3
  %v56 = vand.u32 %v54, 7
  %v57 = vsub.s32 0, %v56
  %v58 = vsel %vm52, %v57, %v56
  %vm59 = vcmp.lt.s32.totalorder %v19, 0
  %v60 = vsub.s32 0, %v19
  %v61 = vsel %vm59, %v60, %v19
  %v62 = vshrl.u32 %v61, 3
  %v63 = vand.u32 %v61, 7
  %v64 = vsub.s32 0, %v63
  %v65 = vsel %vm59, %v64, %v63
  %vm66 = vcmp.lt.s32.totalorder %v20, 0
  %v67 = vsub.s32 0, %v20
  %v68 = vsel %vm66, %v67, %v20
  %v69 = vshrl.u32 %v68, 3
  %v70 = vand.u32 %v68, 7
  %v71 = vsub.s32 0, %v70
  %v72 = vsel %vm66, %v71, %v70
  %vm73 = vcmp.lt.s32.totalorder %v21, 0
  %v74 = vsub.s32 0, %v21
  %v75 = vsel %vm73, %v74, %v21
  %v76 = vshrl.u32 %v75, 3
  %v77 = vand.u32 %v75, 7
  %v78 = vsub.s32 0, %v77
  %v79 = vsel %vm73, %v78, %v77
  %vm80 = vcmp.lt.s32.totalorder %v22, 0
  %v81 = vsub.s32 0, %v22
  %v82 = vsel %vm80, %v81, %v22
  %v83 = vshrl.u32 %v82, 3
  %v84 = vand.u32 %v82, 7
  %v85 = vsub.s32 0, %v84
  %v86 = vsel %vm80, %v85, %v84
  %vm87 = vcmp.lt.s32.totalorder %v23, 0
  %v88 = vsub.s32 0, %v23
  %v89 = vsel %vm87, %v88, %v23
  %v90 = vshrl.u32 %v89, 3
  %v91 = vand.u32 %v89, 7
  %v92 = vsub.s32 0, %v91
  %v93 = vsel %vm87, %v92, %v91
  %vm94 = vcmp.lt.s32.totalorder %v24, 0
  %v95 = vsub.s32 0, %v24
  %v96 = vsel %vm94, %v95, %v24
  %v97 = vshrl.u32 %v96, 3
  %v98 = vand.u32 %v96, 7
  %v99 = vsub.s32 0, %v98
  %v100 = vsel %vm94, %v99, %v98
  %vm101 = vcmp.lt.s32.totalorder %v25, 0
  %v102 = vsub.s32 0, %v25
  %v103 = vsel %vm101, %v102, %v25
  %v104 = vshrl.u32 %v103, 3
  %v105 = vand.u32 %v103, 7
  %v106 = vsub.s32 0, %v105
  %v107 = vsel %vm101, %v106, %v105
  %vm108 = vcmp.lt.s32.totalorder %v26, 0
  %v109 = vsub.s32 0, %v26
  %v110 = vsel %vm108, %v109, %v26
  %v111 = vshrl.u32 %v110, 3
  %v112 = vand.u32 %v110, 7
  %v113 = vsub.s32 0, %v112
  %v114 = vsel %vm108, %v113, %v112
  %vm115 = vcmp.lt.s32.totalorder %v27, 0
  %v116 = vsub.s32 0, %v27
  %v117 = vsel %vm115, %v116, %v27
  %v118 = vshrl.u32 %v117, 3
  %v119 = vand.u32 %v117, 7
  %v120 = vsub.s32 0, %v119
  %v121 = vsel %vm115, %v120, %v119
  %vm122 = vcmp.lt.s32.totalorder %v28, 0
  %v123 = vsub.s32 0, %v28
  %v124 = vsel %vm122, %v123, %v28
  %v125 = vshrl.u32 %v124, 3
  %v126 = vand.u32 %v124, 7
  %v127 = vsub.s32 0, %v126
  %v128 = vsel %vm122, %v127, %v126
  %vm129 = vcmp.lt.s32.totalorder %v29, 0
  %v130 = vsub.s32 0, %v29
  %v131 = vsel %vm129, %v130, %v29
  %v132 = vshrl.u32 %v131, 3
  %v133 = vand.u32 %v131, 7
  %v134 = vsub.s32 0, %v133
  %v135 = vsel %vm129, %v134, %v133
  %vm136 = vcmp.lt.s32.totalorder %v30, 0
  %v137 = vsub.s32 0, %v30
  %v138 = vsel %vm136, %v137, %v30
  %v139 = vshrl.u32 %v138, 3
  %v140 = vand.u32 %v138, 7
  %v141 = vsub.s32 0, %v140
  %v142 = vsel %vm136, %v141, %v140
  %vm143 = vcmp.ne.s32.totalorder %v37, 0
  %vm144 = vcmp.ne.s32.totalorder %v44, 0
  %vm145 = vcmp.ne.s32.totalorder %v51, 0
  %vm146 = vcmp.ne.s32.totalorder %v58, 0
  %vm147 = vcmp.ne.s32.totalorder %v65, 0
  %vm148 = vcmp.ne.s32.totalorder %v72, 0
  %vm149 = vcmp.ne.s32.totalorder %v79, 0
  %vm150 = vcmp.ne.s32.totalorder %v86, 0
  %vm151 = vcmp.ne.s32.totalorder %v93, 0
  %vm152 = vcmp.ne.s32.totalorder %v100, 0
  %vm153 = vcmp.ne.s32.totalorder %v107, 0
  %vm154 = vcmp.ne.s32.totalorder %v114, 0
  %vm155 = vcmp.ne.s32.totalorder %v121, 0
  %vm156 = vcmp.ne.s32.totalorder %v128, 0
  %vm157 = vcmp.ne.s32.totalorder %v135, 0
  %vm158 = vcmp.ne.s32.totalorder %v142, 0
  %vm159 = vcmp.lt.s32.totalorder %v37, 0
  %vm160 = vcmp.lt.s32.totalorder %v44, 0
  %vm161 = vcmp.lt.s32.totalorder %v51, 0
  %vm162 = vcmp.lt.s32.totalorder %v58, 0
  %vm163 = vcmp.lt.s32.totalorder %v65, 0
  %vm164 = vcmp.lt.s32.totalorder %v72, 0
  %vm165 = vcmp.lt.s32.totalorder %v79, 0
  %vm166 = vcmp.lt.s32.totalorder %v86, 0
  %vm167 = vcmp.lt.s32.totalorder %v93, 0
  %vm168 = vcmp.lt.s32.totalorder %v100, 0
  %vm169 = vcmp.lt.s32.totalorder %v107, 0
  %vm170 = vcmp.lt.s32.totalorder %v114, 0
  %vm171 = vcmp.lt.s32.totalorder %v121, 0
  %vm172 = vcmp.lt.s32.totalorder %v128, 0
  %vm173 = vcmp.lt.s32.totalorder %v135, 0
  %vm174 = vcmp.lt.s32.totalorder %v142, 0
  %vm175 = vmand %vm159, %vm143
  %vm176 = vmand %vm160, %vm144
  %vm177 = vmand %vm161, %vm145
  %vm178 = vmand %vm162, %vm146
  %vm179 = vmand %vm163, %vm147
  %vm180 = vmand %vm164, %vm148
  %vm181 = vmand %vm165, %vm149
  %vm182 = vmand %vm166, %vm150
  %vm183 = vmand %vm167, %vm151
  %vm184 = vmand %vm168, %vm152
  %vm185 = vmand %vm169, %vm153
  %vm186 = vmand %vm170, %vm154
  %vm187 = vmand %vm171, %vm155
  %vm188 = vmand %vm172, %vm156
  %vm189 = vmand %vm173, %vm157
  %vm190 = vmand %vm174, %vm158
  %v191 = vadd.s32 %v37, 8
  %v192 = vadd.s32 %v44, 8
  %v193 = vadd.s32 %v51, 8
  %v194 = vadd.s32 %v58, 8
  %v195 = vadd.s32 %v65, 8
  %v196 = vadd.s32 %v72, 8
  %v197 = vadd.s32 %v79, 8
  %v198 = vadd.s32 %v86, 8
  %v199 = vadd.s32 %v93, 8
  %v200 = vadd.s32 %v100, 8
  %v201 = vadd.s32 %v107, 8
  %v202 = vadd.s32 %v114, 8
  %v203 = vadd.s32 %v121, 8
  %v204 = vadd.s32 %v128, 8
  %v205 = vadd.s32 %v135, 8
  %v206 = vadd.s32 %v142, 8
  %v207 = vsel %vm175, %v191, %v37
  %v208 = vsel %vm176, %v192, %v44
  %v209 = vsel %vm177, %v193, %v51
  %v210 = vsel %vm178, %v194, %v58
  %v211 = vsel %vm179, %v195, %v65
  %v212 = vsel %vm180, %v196, %v72
  %v213 = vsel %vm181, %v197, %v79
  %v214 = vsel %vm182, %v198, %v86
  %v215 = vsel %vm183, %v199, %v93
  %v216 = vsel %vm184, %v200, %v100
  %v217 = vsel %vm185, %v201, %v107
  %v218 = vsel %vm186, %v202, %v114
  %v219 = vsel %vm187, %v203, %v121
  %v220 = vsel %vm188, %v204, %v128
  %v221 = vsel %vm189, %v205, %v135
  %v222 = vsel %vm190, %v206, %v142
  %v223 = vlaneseq
  %v224 = vand.u32 %v223, 127
  %vm225 = vcmp.lt.s32.totalorder %v224, 0
  %v226 = vsub.s32 0, %v224
  %v227 = vsel %vm225, %v226, %v224
  %v228 = vshrl.u32 %v227, 3
  %v229 = vand.u32 %v227, 7
  %v230 = vsub.s32 0, %v229
  %v231 = vsel %vm225, %v230, %v229
  %vm232 = vcmp.ne.s32.totalorder %v231, 0
  %vm233 = vcmp.lt.s32.totalorder %v231, 0
  %vm234 = vmand %vm233, %vm232
  %v235 = vadd.s32 %v231, 8
  %v236 = vsel %vm234, %v235, %v231
  %vm237 = vcmp.eq.s32.totalorder %v207, %v236
  %vm238 = vcmp.eq.s32.totalorder %v208, %v236
  %vm239 = vcmp.eq.s32.totalorder %v209, %v236
  %vm240 = vcmp.eq.s32.totalorder %v210, %v236
  %vm241 = vcmp.eq.s32.totalorder %v211, %v236
  %vm242 = vcmp.eq.s32.totalorder %v212, %v236
  %vm243 = vcmp.eq.s32.totalorder %v213, %v236
  %vm244 = vcmp.eq.s32.totalorder %v214, %v236
  %vm245 = vcmp.eq.s32.totalorder %v215, %v236
  %vm246 = vcmp.eq.s32.totalorder %v216, %v236
  %vm247 = vcmp.eq.s32.totalorder %v217, %v236
  %vm248 = vcmp.eq.s32.totalorder %v218, %v236
  %vm249 = vcmp.eq.s32.totalorder %v219, %v236
  %vm250 = vcmp.eq.s32.totalorder %v220, %v236
  %vm251 = vcmp.eq.s32.totalorder %v221, %v236
  %vm252 = vcmp.eq.s32.totalorder %v222, %v236
  %v253 = vsel %vm237, 1, 0
  %v254 = vsel %vm238, 1, 0
  %v255 = vsel %vm239, 1, 0
  %v256 = vsel %vm240, 1, 0
  %v257 = vsel %vm241, 1, 0
  %v258 = vsel %vm242, 1, 0
  %v259 = vsel %vm243, 1, 0
  %v260 = vsel %vm244, 1, 0
  %v261 = vsel %vm245, 1, 0
  %v262 = vsel %vm246, 1, 0
  %v263 = vsel %vm247, 1, 0
  %v264 = vsel %vm248, 1, 0
  %v265 = vsel %vm249, 1, 0
  %v266 = vsel %vm250, 1, 0
  %v267 = vsel %vm251, 1, 0
  %v268 = vsel %vm252, 1, 0
  %v269 = vcvt.s32.f32 %v253
  %v270 = vcvt.s32.f32 %v254
  %v271 = vcvt.s32.f32 %v255
  %v272 = vcvt.s32.f32 %v256
  %v273 = vcvt.s32.f32 %v257
  %v274 = vcvt.s32.f32 %v258
  %v275 = vcvt.s32.f32 %v259
  %v276 = vcvt.s32.f32 %v260
  %v277 = vcvt.s32.f32 %v261
  %v278 = vcvt.s32.f32 %v262
  %v279 = vcvt.s32.f32 %v263
  %v280 = vcvt.s32.f32 %v264
  %v281 = vcvt.s32.f32 %v265
  %v282 = vcvt.s32.f32 %v266
  %v283 = vcvt.s32.f32 %v267
  %v284 = vcvt.s32.f32 %v268
  %vm285 = vcmp.lt.s32.totalorder %v15, 0
  %v286 = vsub.s32 0, %v15
  %v287 = vsel %vm285, %v286, %v15
  %v288 = vshrl.u32 %v287, 4
  %v289 = vand.u32 %v287, 15
  %v290 = vsub.s32 0, %v289
  %v291 = vsel %vm285, %v290, %v289
  %vm292 = vcmp.lt.s32.totalorder %v16, 0
  %v293 = vsub.s32 0, %v16
  %v294 = vsel %vm292, %v293, %v16
  %v295 = vshrl.u32 %v294, 4
  %v296 = vand.u32 %v294, 15
  %v297 = vsub.s32 0, %v296
  %v298 = vsel %vm292, %v297, %v296
  %vm299 = vcmp.lt.s32.totalorder %v17, 0
  %v300 = vsub.s32 0, %v17
  %v301 = vsel %vm299, %v300, %v17
  %v302 = vshrl.u32 %v301, 4
  %v303 = vand.u32 %v301, 15
  %v304 = vsub.s32 0, %v303
  %v305 = vsel %vm299, %v304, %v303
  %vm306 = vcmp.lt.s32.totalorder %v18, 0
  %v307 = vsub.s32 0, %v18
  %v308 = vsel %vm306, %v307, %v18
  %v309 = vshrl.u32 %v308, 4
  %v310 = vand.u32 %v308, 15
  %v311 = vsub.s32 0, %v310
  %v312 = vsel %vm306, %v311, %v310
  %vm313 = vcmp.ne.s32.totalorder %v291, 0
  %vm314 = vcmp.ne.s32.totalorder %v298, 0
  %vm315 = vcmp.ne.s32.totalorder %v305, 0
  %vm316 = vcmp.ne.s32.totalorder %v312, 0
  %vm317 = vcmp.lt.s32.totalorder %v291, 0
  %vm318 = vcmp.lt.s32.totalorder %v298, 0
  %vm319 = vcmp.lt.s32.totalorder %v305, 0
  %vm320 = vcmp.lt.s32.totalorder %v312, 0
  %vm321 = vmand %vm317, %vm313
  %vm322 = vmand %vm318, %vm314
  %vm323 = vmand %vm319, %vm315
  %vm324 = vmand %vm320, %vm316
  %v325 = vadd.s32 %v291, 16
  %v326 = vadd.s32 %v298, 16
  %v327 = vadd.s32 %v305, 16
  %v328 = vadd.s32 %v312, 16
  %v329 = vsel %vm321, %v325, %v291
  %v330 = vsel %vm322, %v326, %v298
  %v331 = vsel %vm323, %v327, %v305
  %v332 = vsel %vm324, %v328, %v312
  %vm333 = vcmp.ne.s32.totalorder %v329, 0
  %vm334 = vcmp.ne.s32.totalorder %v330, 0
  %vm335 = vcmp.ne.s32.totalorder %v331, 0
  %vm336 = vcmp.ne.s32.totalorder %v332, 0
  %vm337 = vcmp.ne.s32.totalorder %v329, 15
  %vm338 = vcmp.ne.s32.totalorder %v330, 15
  %vm339 = vcmp.ne.s32.totalorder %v331, 15
  %vm340 = vcmp.ne.s32.totalorder %v332, 15
  %v341 = vld [vmem:[%s0] sm:$0xff]
  %v342 = vld [vmem:[%s0 + $0x8] sm:$0xff]
  %v343 = vld [vmem:[%s0 + $0x10] sm:$0xff]
  %v344 = vld [vmem:[%s0 + $0x18] sm:$0xff]
  %v345 = vld [vmem:[%s2] sm:$0x7]
  %v346 = vadd.f32 %v341, %v342
  %v347 = vadd.f32 %v346, %v343
  %v348 = vadd.f32 %v347, %v344
  %v349 = vrot.slane %v348, 4
  %v350 = vadd.f32 %v348, %v349
  %v351 = vrot.slane %v350, 2
  %v352 = vadd.f32 %v350, %v351
  %v353 = vrot.slane %v352, 1
  %v354 = vadd.f32 %v352, %v353
  %v355 = vmul.f32 %v341, %v341
  %v356 = vmul.f32 %v342, %v342
  %v357 = vmul.f32 %v343, %v343
  %v358 = vmul.f32 %v344, %v344
  %v359 = vadd.f32 %v355, %v356
  %v360 = vadd.f32 %v359, %v357
  %v361 = vadd.f32 %v360, %v358
  %v362 = vrot.slane %v361, 4
  %v363 = vadd.f32 %v361, %v362
  %v364 = vrot.slane %v363, 2
  %v365 = vadd.f32 %v363, %v364
  %v366 = vrot.slane %v365, 1
  %v367 = vadd.f32 %v365, %v366
  %vm368 = vcmask 1040384
  %v369 = vsel %vm368, %v354, %v367
  %370 = vmatpush.msra.mxu0 %v284
  %371 = vmatpush.msra.mxu0 %v283
  %372 = vmatpush.msra.mxu0 %v282
  %373 = vmatpush.msra.mxu0 %v281
  %374 = vmatpush.msra.mxu0 %v280
  %375 = vmatpush.msra.mxu0 %v279
  %376 = vmatpush.msra.mxu0 %v278
  %377 = vmatpush.msra.mxu0 %v277
  %378 = vmatpush.msra.mxu0 %v276
  %379 = vmatpush.msra.mxu0 %v275
  %380 = vmatpush.msra.mxu0 %v274
  %381 = vmatpush.msra.mxu0 %v273
  %382 = vmatpush.msra.mxu0 %v272
  %383 = vmatpush.msra.mxu0 %v271
  %384 = vmatpush.msra.mxu0 %v270
  %385 = vmatpush.msra.mxu0 %v269
  %386 = vmatmul.f32.gmra.mxu0 %v369
  %v387 = vpop.f32.mrf.mxu0
  %v388 = vadd.f32 0.0, %v387
  %389 = vdwg.mxu0
  %v390 = vmul.f32 %v388, 0.001953125
  %v391 = vmul.f32 %v390, %v390
  %v393 = vrot.slane %v391, 7
  %v395 = vsub.f32 %v390, %v393
  %v396 = vadd.f32 %v395, 1e-05
  %v397 = vrsqrt.pop %v396
  %v398 = vmul.f32 %v397, %v396
  %v399 = vmul.f32 %v398, %v397
  %v400 = vmul.f32 0.5, %v399
  %v401 = vsub.f32 1.5, %v400
  %v402 = vmul.f32 %v397, %v401
  %vm403 = vweird.f32 %v396
  %vm404 = vweird.f32 %v397
  %vm405 = vmor %vm403, %vm404
  %v406 = vsel %vm405, %v397, %v402
  %v408 = vrot.slane %v406, 1
  %v410 = vmul.f32 %v345, %v408
  %v411 = vmul.f32 %v390, %v410
  %v413 = vrot.slane %v411, 7
  %v415 = vsub.f32 %v345, %v413
  %v416 = vperm.slane %v410, 0
  %v417 = vmul.f32 %v341, %v416
  %v418 = vmul.f32 %v342, %v416
  %v419 = vmul.f32 %v343, %v416
  %v420 = vmul.f32 %v344, %v416
  %v421 = vperm.slane %v415, 1
  %v422 = vadd.f32 %v417, %v421
  %v423 = vadd.f32 %v418, %v421
  %v424 = vadd.f32 %v419, %v421
  %v425 = vadd.f32 %v420, %v421
  %v426 = vmax.f32 %v422, 0.0
  %v427 = vmax.f32 %v423, 0.0
  %v428 = vmax.f32 %v424, 0.0
  %v429 = vmax.f32 %v425, 0.0
  %v430 = vrot.slane %v426, 7
  %v431 = vrot.slane %v427, 7
  %v432 = vrot.slane %v428, 7
  %v433 = vrot.slane %v429, 7
  %vm434 = vcmp.lt.s32.totalorder %v15, 1
  %v435 = vsel %vm434, %v432, %v433
  %v436 = vsel %vm434, %v431, %v432
  %v437 = vsel %vm434, %v430, %v431
  %v438 = vsel %vm434, %v433, %v430
  %v439 = vsel %vm333, %v438, 0.0
  %v440 = vsel %vm334, %v437, 0.0
  %v441 = vsel %vm335, %v436, 0.0
  %v442 = vsel %vm336, %v435, 0.0
  %v443 = vrot.slane %v426, 1
  %v444 = vrot.slane %v427, 1
  %v445 = vrot.slane %v428, 1
  %v446 = vrot.slane %v429, 1
  %vm447 = vcmp.lt.s32.totalorder %v15, 7
  %v448 = vsel %vm447, %v445, %v446
  %v449 = vsel %vm447, %v444, %v445
  %v450 = vsel %vm447, %v443, %v444
  %v451 = vsel %vm447, %v446, %v443
  %v452 = vsel %vm337, %v450, 0.0
  %v453 = vsel %vm338, %v449, 0.0
  %v454 = vsel %vm339, %v448, 0.0
  %v455 = vsel %vm340, %v451, 0.0
  %v456 = vld [vmem:[%s1] sm:$0xff]
  %v457 = vld [vmem:[%s1 + $0x8] sm:$0xff]
  %v458 = vld [vmem:[%s1 + $0x10] sm:$0xff]
  %v459 = vld [vmem:[%s1 + $0x18] sm:$0xff]
  %v460 = vld [vmem:[%s1 + $0x20] sm:$0xff]
  %v461 = vld [vmem:[%s1 + $0x28] sm:$0xff]
  %v462 = vld [vmem:[%s1 + $0x30] sm:$0xff]
  %v463 = vld [vmem:[%s1 + $0x38] sm:$0xff]
  %v464 = vld [vmem:[%s1 + $0x40] sm:$0xff]
  %v465 = vld [vmem:[%s1 + $0x48] sm:$0xff]
  %v466 = vld [vmem:[%s1 + $0x50] sm:$0xff]
  %v467 = vld [vmem:[%s1 + $0x58] sm:$0xff]
  %v468 = vld [vmem:[%s1 + $0x60] sm:$0xff]
  %v469 = vld [vmem:[%s1 + $0x68] sm:$0xff]
  %v470 = vld [vmem:[%s1 + $0x70] sm:$0xff]
  %v471 = vld [vmem:[%s1 + $0x78] sm:$0xff]
  %v472 = vld [vmem:[%s1 + $0x80] sm:$0xff]
  %v473 = vld [vmem:[%s1 + $0x88] sm:$0xff]
  %v474 = vld [vmem:[%s1 + $0x90] sm:$0xff]
  %v475 = vld [vmem:[%s1 + $0x98] sm:$0xff]
  %v476 = vld [vmem:[%s1 + $0xa0] sm:$0xff]
  %v477 = vld [vmem:[%s1 + $0xa8] sm:$0xff]
  %v478 = vld [vmem:[%s1 + $0xb0] sm:$0xff]
  %v479 = vld [vmem:[%s1 + $0xb8] sm:$0xff]
  %v480 = vld [vmem:[%s1 + $0xc0] sm:$0xff]
  %v481 = vld [vmem:[%s1 + $0xc8] sm:$0xff]
  %v482 = vld [vmem:[%s1 + $0xd0] sm:$0xff]
  %v483 = vld [vmem:[%s1 + $0xd8] sm:$0xff]
  %v484 = vld [vmem:[%s1 + $0xe0] sm:$0xff]
  %v485 = vld [vmem:[%s1 + $0xe8] sm:$0xff]
  %v486 = vld [vmem:[%s1 + $0xf0] sm:$0xff]
  %v487 = vld [vmem:[%s1 + $0xf8] sm:$0xff]
  %v488 = vld [vmem:[%s1 + $0x100] sm:$0xff]
  %v489 = vld [vmem:[%s1 + $0x108] sm:$0xff]
  %v490 = vld [vmem:[%s1 + $0x110] sm:$0xff]
  %v491 = vld [vmem:[%s1 + $0x118] sm:$0xff]
  %v492 = vld [vmem:[%s1 + $0x120] sm:$0xff]
  %v493 = vld [vmem:[%s1 + $0x128] sm:$0xff]
  %v494 = vld [vmem:[%s1 + $0x130] sm:$0xff]
  %v495 = vld [vmem:[%s1 + $0x138] sm:$0xff]
  %v496 = vld [vmem:[%s1 + $0x140] sm:$0xff]
  %v497 = vld [vmem:[%s1 + $0x148] sm:$0xff]
  %v498 = vld [vmem:[%s1 + $0x150] sm:$0xff]
  %v499 = vld [vmem:[%s1 + $0x158] sm:$0xff]
  %v500 = vld [vmem:[%s1 + $0x160] sm:$0xff]
  %v501 = vld [vmem:[%s1 + $0x168] sm:$0xff]
  %v502 = vld [vmem:[%s1 + $0x170] sm:$0xff]
  %v503 = vld [vmem:[%s1 + $0x178] sm:$0xff]
  %v504 = vperm.slane %v345, 2
  %505 = vmatpush.msra.mxu0 %v471
  %506 = vmatpush.msra.mxu0 %v470
  %507 = vmatpush.msra.mxu0 %v469
  %508 = vmatpush.msra.mxu0 %v468
  %509 = vmatpush.msra.mxu0 %v467
  %510 = vmatpush.msra.mxu0 %v466
  %511 = vmatpush.msra.mxu0 %v465
  %512 = vmatpush.msra.mxu0 %v464
  %513 = vmatpush.msra.mxu0 %v463
  %514 = vmatpush.msra.mxu0 %v462
  %515 = vmatpush.msra.mxu0 %v461
  %516 = vmatpush.msra.mxu0 %v460
  %517 = vmatpush.msra.mxu0 %v459
  %518 = vmatpush.msra.mxu0 %v458
  %519 = vmatpush.msra.mxu0 %v457
  %520 = vmatpush.msra.mxu0 %v456
  %521 = vmatmul.f32.gmra.mxu0 %v439
  %v522 = vpop.f32.mrf.mxu0
  %v523 = vadd.f32 %v504, %v522
  %524 = vmatmul.f32.gmra.mxu0 %v440
  %v525 = vpop.f32.mrf.mxu0
  %v526 = vadd.f32 %v504, %v525
  %527 = vmatmul.f32.gmra.mxu0 %v441
  %v528 = vpop.f32.mrf.mxu0
  %v529 = vadd.f32 %v504, %v528
  %530 = vmatmul.f32.gmra.mxu0 %v442
  %v531 = vpop.f32.mrf.mxu0
  %v532 = vadd.f32 %v504, %v531
  %533 = vdwg.mxu0
  %534 = vmatpush.msra.mxu0 %v487
  %535 = vmatpush.msra.mxu0 %v486
  %536 = vmatpush.msra.mxu0 %v485
  %537 = vmatpush.msra.mxu0 %v484
  %538 = vmatpush.msra.mxu0 %v483
  %539 = vmatpush.msra.mxu0 %v482
  %540 = vmatpush.msra.mxu0 %v481
  %541 = vmatpush.msra.mxu0 %v480
  %542 = vmatpush.msra.mxu0 %v479
  %543 = vmatpush.msra.mxu0 %v478
  %544 = vmatpush.msra.mxu0 %v477
  %545 = vmatpush.msra.mxu0 %v476
  %546 = vmatpush.msra.mxu0 %v475
  %547 = vmatpush.msra.mxu0 %v474
  %548 = vmatpush.msra.mxu0 %v473
  %549 = vmatpush.msra.mxu0 %v472
  %550 = vmatmul.f32.gmra.mxu0 %v426
  %v551 = vpop.f32.mrf.mxu0
  %v552 = vadd.f32 %v523, %v551
  %553 = vmatmul.f32.gmra.mxu0 %v427
  %v554 = vpop.f32.mrf.mxu0
  %v555 = vadd.f32 %v526, %v554
  %556 = vmatmul.f32.gmra.mxu0 %v428
  %v557 = vpop.f32.mrf.mxu0
  %v558 = vadd.f32 %v529, %v557
  %559 = vmatmul.f32.gmra.mxu0 %v429
  %v560 = vpop.f32.mrf.mxu0
  %v561 = vadd.f32 %v532, %v560
  %562 = vdwg.mxu0
  %563 = vmatpush.msra.mxu0 %v503
  %564 = vmatpush.msra.mxu0 %v502
  %565 = vmatpush.msra.mxu0 %v501
  %566 = vmatpush.msra.mxu0 %v500
  %567 = vmatpush.msra.mxu0 %v499
  %568 = vmatpush.msra.mxu0 %v498
  %569 = vmatpush.msra.mxu0 %v497
  %570 = vmatpush.msra.mxu0 %v496
  %571 = vmatpush.msra.mxu0 %v495
  %572 = vmatpush.msra.mxu0 %v494
  %573 = vmatpush.msra.mxu0 %v493
  %574 = vmatpush.msra.mxu0 %v492
  %575 = vmatpush.msra.mxu0 %v491
  %576 = vmatpush.msra.mxu0 %v490
  %577 = vmatpush.msra.mxu0 %v489
  %578 = vmatpush.msra.mxu0 %v488
  %579 = vmatmul.f32.gmra.mxu0 %v452
  %v580 = vpop.f32.mrf.mxu0
  %v581 = vadd.f32 %v552, %v580
  %582 = vmatmul.f32.gmra.mxu0 %v453
  %v583 = vpop.f32.mrf.mxu0
  %v584 = vadd.f32 %v555, %v583
  %585 = vmatmul.f32.gmra.mxu0 %v454
  %v586 = vpop.f32.mrf.mxu0
  %v587 = vadd.f32 %v558, %v586
  %588 = vmatmul.f32.gmra.mxu0 %v455
  %v589 = vpop.f32.mrf.mxu0
  %v590 = vadd.f32 %v561, %v589
  %591 = vdwg.mxu0
  %s592 = scalar_lea.vmem %s2, 4
  %v593 = vld [vmem:[%s592] sm:$0x7]
  %v594 = vadd.f32 %v581, %v584
  %v595 = vadd.f32 %v594, %v587
  %v596 = vadd.f32 %v595, %v590
  %v597 = vrot.slane %v596, 4
  %v598 = vadd.f32 %v596, %v597
  %v599 = vrot.slane %v598, 2
  %v600 = vadd.f32 %v598, %v599
  %v601 = vrot.slane %v600, 1
  %v602 = vadd.f32 %v600, %v601
  %v603 = vmul.f32 %v581, %v581
  %v604 = vmul.f32 %v584, %v584
  %v605 = vmul.f32 %v587, %v587
  %v606 = vmul.f32 %v590, %v590
  %v607 = vadd.f32 %v603, %v604
  %v608 = vadd.f32 %v607, %v605
  %v609 = vadd.f32 %v608, %v606
  %v610 = vrot.slane %v609, 4
  %v611 = vadd.f32 %v609, %v610
  %v612 = vrot.slane %v611, 2
  %v613 = vadd.f32 %v611, %v612
  %v614 = vrot.slane %v613, 1
  %v615 = vadd.f32 %v613, %v614
  %v616 = vsel %vm368, %v602, %v615
  %617 = vmatpush.msra.mxu0 %v284
  %618 = vmatpush.msra.mxu0 %v283
  %619 = vmatpush.msra.mxu0 %v282
  %620 = vmatpush.msra.mxu0 %v281
  %621 = vmatpush.msra.mxu0 %v280
  %622 = vmatpush.msra.mxu0 %v279
  %623 = vmatpush.msra.mxu0 %v278
  %624 = vmatpush.msra.mxu0 %v277
  %625 = vmatpush.msra.mxu0 %v276
  %626 = vmatpush.msra.mxu0 %v275
  %627 = vmatpush.msra.mxu0 %v274
  %628 = vmatpush.msra.mxu0 %v273
  %629 = vmatpush.msra.mxu0 %v272
  %630 = vmatpush.msra.mxu0 %v271
  %631 = vmatpush.msra.mxu0 %v270
  %632 = vmatpush.msra.mxu0 %v269
  %633 = vmatmul.f32.gmra.mxu0 %v616
  %v634 = vpop.f32.mrf.mxu0
  %v635 = vadd.f32 0.0, %v634
  %636 = vdwg.mxu0
  %v637 = vmul.f32 %v635, 0.001953125
  %v638 = vmul.f32 %v637, %v637
  %v640 = vrot.slane %v638, 7
  %v642 = vsub.f32 %v637, %v640
  %v643 = vadd.f32 %v642, 1e-05
  %v644 = vrsqrt.pop %v643
  %v645 = vmul.f32 %v644, %v643
  %v646 = vmul.f32 %v645, %v644
  %v647 = vmul.f32 0.5, %v646
  %v648 = vsub.f32 1.5, %v647
  %v649 = vmul.f32 %v644, %v648
  %vm650 = vweird.f32 %v643
  %vm651 = vweird.f32 %v644
  %vm652 = vmor %vm650, %vm651
  %v653 = vsel %vm652, %v644, %v649
  %v655 = vrot.slane %v653, 1
  %v657 = vmul.f32 %v593, %v655
  %v658 = vmul.f32 %v637, %v657
  %v660 = vrot.slane %v658, 7
  %v662 = vsub.f32 %v593, %v660
  %v663 = vperm.slane %v657, 0
  %v664 = vmul.f32 %v581, %v663
  %v665 = vmul.f32 %v584, %v663
  %v666 = vmul.f32 %v587, %v663
  %v667 = vmul.f32 %v590, %v663
  %v668 = vperm.slane %v662, 1
  %v669 = vadd.f32 %v664, %v668
  %v670 = vadd.f32 %v665, %v668
  %v671 = vadd.f32 %v666, %v668
  %v672 = vadd.f32 %v667, %v668
  %v673 = vmax.f32 %v669, 0.0
  %v674 = vmax.f32 %v670, 0.0
  %v675 = vmax.f32 %v671, 0.0
  %v676 = vmax.f32 %v672, 0.0
  %v677 = vrot.slane %v673, 7
  %v678 = vrot.slane %v674, 7
  %v679 = vrot.slane %v675, 7
  %v680 = vrot.slane %v676, 7
  %v681 = vsel %vm434, %v679, %v680
  %v682 = vsel %vm434, %v678, %v679
  %v683 = vsel %vm434, %v677, %v678
  %v684 = vsel %vm434, %v680, %v677
  %v685 = vsel %vm333, %v684, 0.0
  %v686 = vsel %vm334, %v683, 0.0
  %v687 = vsel %vm335, %v682, 0.0
  %v688 = vsel %vm336, %v681, 0.0
  %v689 = vrot.slane %v673, 1
  %v690 = vrot.slane %v674, 1
  %v691 = vrot.slane %v675, 1
  %v692 = vrot.slane %v676, 1
  %v693 = vsel %vm447, %v691, %v692
  %v694 = vsel %vm447, %v690, %v691
  %v695 = vsel %vm447, %v689, %v690
  %v696 = vsel %vm447, %v692, %v689
  %v697 = vsel %vm337, %v695, 0.0
  %v698 = vsel %vm338, %v694, 0.0
  %v699 = vsel %vm339, %v693, 0.0
  %v700 = vsel %vm340, %v696, 0.0
  %s701 = scalar_lea.vmem %s1, 384
  %v702 = vld [vmem:[%s701] sm:$0xff]
  %v703 = vld [vmem:[%s701 + $0x8] sm:$0xff]
  %v704 = vld [vmem:[%s701 + $0x10] sm:$0xff]
  %v705 = vld [vmem:[%s701 + $0x18] sm:$0xff]
  %v706 = vld [vmem:[%s701 + $0x20] sm:$0xff]
  %v707 = vld [vmem:[%s701 + $0x28] sm:$0xff]
  %v708 = vld [vmem:[%s701 + $0x30] sm:$0xff]
  %v709 = vld [vmem:[%s701 + $0x38] sm:$0xff]
  %v710 = vld [vmem:[%s701 + $0x40] sm:$0xff]
  %v711 = vld [vmem:[%s701 + $0x48] sm:$0xff]
  %v712 = vld [vmem:[%s701 + $0x50] sm:$0xff]
  %v713 = vld [vmem:[%s701 + $0x58] sm:$0xff]
  %v714 = vld [vmem:[%s701 + $0x60] sm:$0xff]
  %v715 = vld [vmem:[%s701 + $0x68] sm:$0xff]
  %v716 = vld [vmem:[%s701 + $0x70] sm:$0xff]
  %v717 = vld [vmem:[%s701 + $0x78] sm:$0xff]
  %v718 = vld [vmem:[%s701 + $0x80] sm:$0xff]
  %v719 = vld [vmem:[%s701 + $0x88] sm:$0xff]
  %v720 = vld [vmem:[%s701 + $0x90] sm:$0xff]
  %v721 = vld [vmem:[%s701 + $0x98] sm:$0xff]
  %v722 = vld [vmem:[%s701 + $0xa0] sm:$0xff]
  %v723 = vld [vmem:[%s701 + $0xa8] sm:$0xff]
  %v724 = vld [vmem:[%s701 + $0xb0] sm:$0xff]
  %v725 = vld [vmem:[%s701 + $0xb8] sm:$0xff]
  %v726 = vld [vmem:[%s701 + $0xc0] sm:$0xff]
  %v727 = vld [vmem:[%s701 + $0xc8] sm:$0xff]
  %v728 = vld [vmem:[%s701 + $0xd0] sm:$0xff]
  %v729 = vld [vmem:[%s701 + $0xd8] sm:$0xff]
  %v730 = vld [vmem:[%s701 + $0xe0] sm:$0xff]
  %v731 = vld [vmem:[%s701 + $0xe8] sm:$0xff]
  %v732 = vld [vmem:[%s701 + $0xf0] sm:$0xff]
  %v733 = vld [vmem:[%s701 + $0xf8] sm:$0xff]
  %v734 = vld [vmem:[%s701 + $0x100] sm:$0xff]
  %v735 = vld [vmem:[%s701 + $0x108] sm:$0xff]
  %v736 = vld [vmem:[%s701 + $0x110] sm:$0xff]
  %v737 = vld [vmem:[%s701 + $0x118] sm:$0xff]
  %v738 = vld [vmem:[%s701 + $0x120] sm:$0xff]
  %v739 = vld [vmem:[%s701 + $0x128] sm:$0xff]
  %v740 = vld [vmem:[%s701 + $0x130] sm:$0xff]
  %v741 = vld [vmem:[%s701 + $0x138] sm:$0xff]
  %v742 = vld [vmem:[%s701 + $0x140] sm:$0xff]
  %v743 = vld [vmem:[%s701 + $0x148] sm:$0xff]
  %v744 = vld [vmem:[%s701 + $0x150] sm:$0xff]
  %v745 = vld [vmem:[%s701 + $0x158] sm:$0xff]
  %v746 = vld [vmem:[%s701 + $0x160] sm:$0xff]
  %v747 = vld [vmem:[%s701 + $0x168] sm:$0xff]
  %v748 = vld [vmem:[%s701 + $0x170] sm:$0xff]
  %v749 = vld [vmem:[%s701 + $0x178] sm:$0xff]
  %v750 = vperm.slane %v593, 2
  %751 = vmatpush.msra.mxu0 %v717
  %752 = vmatpush.msra.mxu0 %v716
  %753 = vmatpush.msra.mxu0 %v715
  %754 = vmatpush.msra.mxu0 %v714
  %755 = vmatpush.msra.mxu0 %v713
  %756 = vmatpush.msra.mxu0 %v712
  %757 = vmatpush.msra.mxu0 %v711
  %758 = vmatpush.msra.mxu0 %v710
  %759 = vmatpush.msra.mxu0 %v709
  %760 = vmatpush.msra.mxu0 %v708
  %761 = vmatpush.msra.mxu0 %v707
  %762 = vmatpush.msra.mxu0 %v706
  %763 = vmatpush.msra.mxu0 %v705
  %764 = vmatpush.msra.mxu0 %v704
  %765 = vmatpush.msra.mxu0 %v703
  %766 = vmatpush.msra.mxu0 %v702
  %767 = vmatmul.f32.gmra.mxu0 %v685
  %v768 = vpop.f32.mrf.mxu0
  %v769 = vadd.f32 %v750, %v768
  %770 = vmatmul.f32.gmra.mxu0 %v686
  %v771 = vpop.f32.mrf.mxu0
  %v772 = vadd.f32 %v750, %v771
  %773 = vmatmul.f32.gmra.mxu0 %v687
  %v774 = vpop.f32.mrf.mxu0
  %v775 = vadd.f32 %v750, %v774
  %776 = vmatmul.f32.gmra.mxu0 %v688
  %v777 = vpop.f32.mrf.mxu0
  %v778 = vadd.f32 %v750, %v777
  %779 = vdwg.mxu0
  %780 = vmatpush.msra.mxu0 %v733
  %781 = vmatpush.msra.mxu0 %v732
  %782 = vmatpush.msra.mxu0 %v731
  %783 = vmatpush.msra.mxu0 %v730
  %784 = vmatpush.msra.mxu0 %v729
  %785 = vmatpush.msra.mxu0 %v728
  %786 = vmatpush.msra.mxu0 %v727
  %787 = vmatpush.msra.mxu0 %v726
  %788 = vmatpush.msra.mxu0 %v725
  %789 = vmatpush.msra.mxu0 %v724
  %790 = vmatpush.msra.mxu0 %v723
  %791 = vmatpush.msra.mxu0 %v722
  %792 = vmatpush.msra.mxu0 %v721
  %793 = vmatpush.msra.mxu0 %v720
  %794 = vmatpush.msra.mxu0 %v719
  %795 = vmatpush.msra.mxu0 %v718
  %796 = vmatmul.f32.gmra.mxu0 %v673
  %v797 = vpop.f32.mrf.mxu0
  %v798 = vadd.f32 %v769, %v797
  %799 = vmatmul.f32.gmra.mxu0 %v674
  %v800 = vpop.f32.mrf.mxu0
  %v801 = vadd.f32 %v772, %v800
  %802 = vmatmul.f32.gmra.mxu0 %v675
  %v803 = vpop.f32.mrf.mxu0
  %v804 = vadd.f32 %v775, %v803
  %805 = vmatmul.f32.gmra.mxu0 %v676
  %v806 = vpop.f32.mrf.mxu0
  %v807 = vadd.f32 %v778, %v806
  %808 = vdwg.mxu0
  %809 = vmatpush.msra.mxu0 %v749
  %810 = vmatpush.msra.mxu0 %v748
  %811 = vmatpush.msra.mxu0 %v747
  %812 = vmatpush.msra.mxu0 %v746
  %813 = vmatpush.msra.mxu0 %v745
  %814 = vmatpush.msra.mxu0 %v744
  %815 = vmatpush.msra.mxu0 %v743
  %816 = vmatpush.msra.mxu0 %v742
  %817 = vmatpush.msra.mxu0 %v741
  %818 = vmatpush.msra.mxu0 %v740
  %819 = vmatpush.msra.mxu0 %v739
  %820 = vmatpush.msra.mxu0 %v738
  %821 = vmatpush.msra.mxu0 %v737
  %822 = vmatpush.msra.mxu0 %v736
  %823 = vmatpush.msra.mxu0 %v735
  %824 = vmatpush.msra.mxu0 %v734
  %825 = vmatmul.f32.gmra.mxu0 %v697
  %v826 = vpop.f32.mrf.mxu0
  %v827 = vadd.f32 %v798, %v826
  %828 = vmatmul.f32.gmra.mxu0 %v698
  %v829 = vpop.f32.mrf.mxu0
  %v830 = vadd.f32 %v801, %v829
  %831 = vmatmul.f32.gmra.mxu0 %v699
  %v832 = vpop.f32.mrf.mxu0
  %v833 = vadd.f32 %v804, %v832
  %834 = vmatmul.f32.gmra.mxu0 %v700
  %v835 = vpop.f32.mrf.mxu0
  %v836 = vadd.f32 %v807, %v835
  %837 = vdwg.mxu0
  %s838 = scalar_lea.vmem %s2, 8
  %v839 = vld [vmem:[%s838] sm:$0x7]
  %v840 = vadd.f32 %v827, %v830
  %v841 = vadd.f32 %v840, %v833
  %v842 = vadd.f32 %v841, %v836
  %v843 = vrot.slane %v842, 4
  %v844 = vadd.f32 %v842, %v843
  %v845 = vrot.slane %v844, 2
  %v846 = vadd.f32 %v844, %v845
  %v847 = vrot.slane %v846, 1
  %v848 = vadd.f32 %v846, %v847
  %v849 = vmul.f32 %v827, %v827
  %v850 = vmul.f32 %v830, %v830
  %v851 = vmul.f32 %v833, %v833
  %v852 = vmul.f32 %v836, %v836
  %v853 = vadd.f32 %v849, %v850
  %v854 = vadd.f32 %v853, %v851
  %v855 = vadd.f32 %v854, %v852
  %v856 = vrot.slane %v855, 4
  %v857 = vadd.f32 %v855, %v856
  %v858 = vrot.slane %v857, 2
  %v859 = vadd.f32 %v857, %v858
  %v860 = vrot.slane %v859, 1
  %v861 = vadd.f32 %v859, %v860
  %v862 = vsel %vm368, %v848, %v861
  %863 = vmatpush.msra.mxu0 %v284
  %864 = vmatpush.msra.mxu0 %v283
  %865 = vmatpush.msra.mxu0 %v282
  %866 = vmatpush.msra.mxu0 %v281
  %867 = vmatpush.msra.mxu0 %v280
  %868 = vmatpush.msra.mxu0 %v279
  %869 = vmatpush.msra.mxu0 %v278
  %870 = vmatpush.msra.mxu0 %v277
  %871 = vmatpush.msra.mxu0 %v276
  %872 = vmatpush.msra.mxu0 %v275
  %873 = vmatpush.msra.mxu0 %v274
  %874 = vmatpush.msra.mxu0 %v273
  %875 = vmatpush.msra.mxu0 %v272
  %876 = vmatpush.msra.mxu0 %v271
  %877 = vmatpush.msra.mxu0 %v270
  %878 = vmatpush.msra.mxu0 %v269
  %879 = vmatmul.f32.gmra.mxu0 %v862
  %v880 = vpop.f32.mrf.mxu0
  %v881 = vadd.f32 0.0, %v880
  %882 = vdwg.mxu0
  %v883 = vmul.f32 %v881, 0.001953125
  %v884 = vmul.f32 %v883, %v883
  %v886 = vrot.slane %v884, 7
  %v888 = vsub.f32 %v883, %v886
  %v889 = vadd.f32 %v888, 1e-05
  %v890 = vrsqrt.pop %v889
  %v891 = vmul.f32 %v890, %v889
  %v892 = vmul.f32 %v891, %v890
  %v893 = vmul.f32 0.5, %v892
  %v894 = vsub.f32 1.5, %v893
  %v895 = vmul.f32 %v890, %v894
  %vm896 = vweird.f32 %v889
  %vm897 = vweird.f32 %v890
  %vm898 = vmor %vm896, %vm897
  %v899 = vsel %vm898, %v890, %v895
  %v901 = vrot.slane %v899, 1
  %v903 = vmul.f32 %v839, %v901
  %v904 = vmul.f32 %v883, %v903
  %v906 = vrot.slane %v904, 7
  %v908 = vsub.f32 %v839, %v906
  %v909 = vperm.slane %v903, 0
  %v910 = vmul.f32 %v827, %v909
  %v911 = vmul.f32 %v830, %v909
  %v912 = vmul.f32 %v833, %v909
  %v913 = vmul.f32 %v836, %v909
  %v914 = vperm.slane %v908, 1
  %v915 = vadd.f32 %v910, %v914
  %v916 = vadd.f32 %v911, %v914
  %v917 = vadd.f32 %v912, %v914
  %v918 = vadd.f32 %v913, %v914
  %v919 = vmax.f32 %v915, 0.0
  %v920 = vmax.f32 %v916, 0.0
  %v921 = vmax.f32 %v917, 0.0
  %v922 = vmax.f32 %v918, 0.0
  %v923 = vrot.slane %v919, 7
  %v924 = vrot.slane %v920, 7
  %v925 = vrot.slane %v921, 7
  %v926 = vrot.slane %v922, 7
  %v927 = vsel %vm434, %v925, %v926
  %v928 = vsel %vm434, %v924, %v925
  %v929 = vsel %vm434, %v923, %v924
  %v930 = vsel %vm434, %v926, %v923
  %v931 = vsel %vm333, %v930, 0.0
  %v932 = vsel %vm334, %v929, 0.0
  %v933 = vsel %vm335, %v928, 0.0
  %v934 = vsel %vm336, %v927, 0.0
  %v935 = vrot.slane %v919, 1
  %v936 = vrot.slane %v920, 1
  %v937 = vrot.slane %v921, 1
  %v938 = vrot.slane %v922, 1
  %v939 = vsel %vm447, %v937, %v938
  %v940 = vsel %vm447, %v936, %v937
  %v941 = vsel %vm447, %v935, %v936
  %v942 = vsel %vm447, %v938, %v935
  %v943 = vsel %vm337, %v941, 0.0
  %v944 = vsel %vm338, %v940, 0.0
  %v945 = vsel %vm339, %v939, 0.0
  %v946 = vsel %vm340, %v942, 0.0
  %s947 = scalar_lea.vmem %s1, 768
  %v948 = vld [vmem:[%s947] sm:$0xff]
  %v949 = vld [vmem:[%s947 + $0x8] sm:$0xff]
  %v950 = vld [vmem:[%s947 + $0x10] sm:$0xff]
  %v951 = vld [vmem:[%s947 + $0x18] sm:$0xff]
  %v952 = vld [vmem:[%s947 + $0x20] sm:$0xff]
  %v953 = vld [vmem:[%s947 + $0x28] sm:$0xff]
  %v954 = vld [vmem:[%s947 + $0x30] sm:$0xff]
  %v955 = vld [vmem:[%s947 + $0x38] sm:$0xff]
  %v956 = vld [vmem:[%s947 + $0x40] sm:$0xff]
  %v957 = vld [vmem:[%s947 + $0x48] sm:$0xff]
  %v958 = vld [vmem:[%s947 + $0x50] sm:$0xff]
  %v959 = vld [vmem:[%s947 + $0x58] sm:$0xff]
  %v960 = vld [vmem:[%s947 + $0x60] sm:$0xff]
  %v961 = vld [vmem:[%s947 + $0x68] sm:$0xff]
  %v962 = vld [vmem:[%s947 + $0x70] sm:$0xff]
  %v963 = vld [vmem:[%s947 + $0x78] sm:$0xff]
  %v964 = vld [vmem:[%s947 + $0x80] sm:$0xff]
  %v965 = vld [vmem:[%s947 + $0x88] sm:$0xff]
  %v966 = vld [vmem:[%s947 + $0x90] sm:$0xff]
  %v967 = vld [vmem:[%s947 + $0x98] sm:$0xff]
  %v968 = vld [vmem:[%s947 + $0xa0] sm:$0xff]
  %v969 = vld [vmem:[%s947 + $0xa8] sm:$0xff]
  %v970 = vld [vmem:[%s947 + $0xb0] sm:$0xff]
  %v971 = vld [vmem:[%s947 + $0xb8] sm:$0xff]
  %v972 = vld [vmem:[%s947 + $0xc0] sm:$0xff]
  %v973 = vld [vmem:[%s947 + $0xc8] sm:$0xff]
  %v974 = vld [vmem:[%s947 + $0xd0] sm:$0xff]
  %v975 = vld [vmem:[%s947 + $0xd8] sm:$0xff]
  %v976 = vld [vmem:[%s947 + $0xe0] sm:$0xff]
  %v977 = vld [vmem:[%s947 + $0xe8] sm:$0xff]
  %v978 = vld [vmem:[%s947 + $0xf0] sm:$0xff]
  %v979 = vld [vmem:[%s947 + $0xf8] sm:$0xff]
  %v980 = vld [vmem:[%s947 + $0x100] sm:$0xff]
  %v981 = vld [vmem:[%s947 + $0x108] sm:$0xff]
  %v982 = vld [vmem:[%s947 + $0x110] sm:$0xff]
  %v983 = vld [vmem:[%s947 + $0x118] sm:$0xff]
  %v984 = vld [vmem:[%s947 + $0x120] sm:$0xff]
  %v985 = vld [vmem:[%s947 + $0x128] sm:$0xff]
  %v986 = vld [vmem:[%s947 + $0x130] sm:$0xff]
  %v987 = vld [vmem:[%s947 + $0x138] sm:$0xff]
  %v988 = vld [vmem:[%s947 + $0x140] sm:$0xff]
  %v989 = vld [vmem:[%s947 + $0x148] sm:$0xff]
  %v990 = vld [vmem:[%s947 + $0x150] sm:$0xff]
  %v991 = vld [vmem:[%s947 + $0x158] sm:$0xff]
  %v992 = vld [vmem:[%s947 + $0x160] sm:$0xff]
  %v993 = vld [vmem:[%s947 + $0x168] sm:$0xff]
  %v994 = vld [vmem:[%s947 + $0x170] sm:$0xff]
  %v995 = vld [vmem:[%s947 + $0x178] sm:$0xff]
  %v996 = vperm.slane %v839, 2
  %997 = vmatpush.msra.mxu0 %v963
  %998 = vmatpush.msra.mxu0 %v962
  %999 = vmatpush.msra.mxu0 %v961
  %1000 = vmatpush.msra.mxu0 %v960
  %1001 = vmatpush.msra.mxu0 %v959
  %1002 = vmatpush.msra.mxu0 %v958
  %1003 = vmatpush.msra.mxu0 %v957
  %1004 = vmatpush.msra.mxu0 %v956
  %1005 = vmatpush.msra.mxu0 %v955
  %1006 = vmatpush.msra.mxu0 %v954
  %1007 = vmatpush.msra.mxu0 %v953
  %1008 = vmatpush.msra.mxu0 %v952
  %1009 = vmatpush.msra.mxu0 %v951
  %1010 = vmatpush.msra.mxu0 %v950
  %1011 = vmatpush.msra.mxu0 %v949
  %1012 = vmatpush.msra.mxu0 %v948
  %1013 = vmatmul.f32.gmra.mxu0 %v931
  %v1014 = vpop.f32.mrf.mxu0
  %v1015 = vadd.f32 %v996, %v1014
  %1016 = vmatmul.f32.gmra.mxu0 %v932
  %v1017 = vpop.f32.mrf.mxu0
  %v1018 = vadd.f32 %v996, %v1017
  %1019 = vmatmul.f32.gmra.mxu0 %v933
  %v1020 = vpop.f32.mrf.mxu0
  %v1021 = vadd.f32 %v996, %v1020
  %1022 = vmatmul.f32.gmra.mxu0 %v934
  %v1023 = vpop.f32.mrf.mxu0
  %v1024 = vadd.f32 %v996, %v1023
  %1025 = vdwg.mxu0
  %1026 = vmatpush.msra.mxu0 %v979
  %1027 = vmatpush.msra.mxu0 %v978
  %1028 = vmatpush.msra.mxu0 %v977
  %1029 = vmatpush.msra.mxu0 %v976
  %1030 = vmatpush.msra.mxu0 %v975
  %1031 = vmatpush.msra.mxu0 %v974
  %1032 = vmatpush.msra.mxu0 %v973
  %1033 = vmatpush.msra.mxu0 %v972
  %1034 = vmatpush.msra.mxu0 %v971
  %1035 = vmatpush.msra.mxu0 %v970
  %1036 = vmatpush.msra.mxu0 %v969
  %1037 = vmatpush.msra.mxu0 %v968
  %1038 = vmatpush.msra.mxu0 %v967
  %1039 = vmatpush.msra.mxu0 %v966
  %1040 = vmatpush.msra.mxu0 %v965
  %1041 = vmatpush.msra.mxu0 %v964
  %1042 = vmatmul.f32.gmra.mxu0 %v919
  %v1043 = vpop.f32.mrf.mxu0
  %v1044 = vadd.f32 %v1015, %v1043
  %1045 = vmatmul.f32.gmra.mxu0 %v920
  %v1046 = vpop.f32.mrf.mxu0
  %v1047 = vadd.f32 %v1018, %v1046
  %1048 = vmatmul.f32.gmra.mxu0 %v921
  %v1049 = vpop.f32.mrf.mxu0
  %v1050 = vadd.f32 %v1021, %v1049
  %1051 = vmatmul.f32.gmra.mxu0 %v922
  %v1052 = vpop.f32.mrf.mxu0
  %v1053 = vadd.f32 %v1024, %v1052
  %1054 = vdwg.mxu0
  %1055 = vmatpush.msra.mxu0 %v995
  %1056 = vmatpush.msra.mxu0 %v994
  %1057 = vmatpush.msra.mxu0 %v993
  %1058 = vmatpush.msra.mxu0 %v992
  %1059 = vmatpush.msra.mxu0 %v991
  %1060 = vmatpush.msra.mxu0 %v990
  %1061 = vmatpush.msra.mxu0 %v989
  %1062 = vmatpush.msra.mxu0 %v988
  %1063 = vmatpush.msra.mxu0 %v987
  %1064 = vmatpush.msra.mxu0 %v986
  %1065 = vmatpush.msra.mxu0 %v985
  %1066 = vmatpush.msra.mxu0 %v984
  %1067 = vmatpush.msra.mxu0 %v983
  %1068 = vmatpush.msra.mxu0 %v982
  %1069 = vmatpush.msra.mxu0 %v981
  %1070 = vmatpush.msra.mxu0 %v980
  %1071 = vmatmul.f32.gmra.mxu0 %v943
  %v1072 = vpop.f32.mrf.mxu0
  %v1073 = vadd.f32 %v1044, %v1072
  %1074 = vmatmul.f32.gmra.mxu0 %v944
  %v1075 = vpop.f32.mrf.mxu0
  %v1076 = vadd.f32 %v1047, %v1075
  %1077 = vmatmul.f32.gmra.mxu0 %v945
  %v1078 = vpop.f32.mrf.mxu0
  %v1079 = vadd.f32 %v1050, %v1078
  %1080 = vmatmul.f32.gmra.mxu0 %v946
  %v1081 = vpop.f32.mrf.mxu0
  %v1082 = vadd.f32 %v1053, %v1081
  %1083 = vdwg.mxu0
  %1084 = vst [vmem:[%s3] sm:$0xff] %v1073
  %1085 = vst [vmem:[%s3 + $0x8] sm:$0xff] %v1076
  %1086 = vst [vmem:[%s3 + $0x10] sm:$0xff] %v1079
  %1087 = vst [vmem:[%s3 + $0x18] sm:$0xff] %v1082
  // Predicated region
  $region14: #{resbl_forward.1} parent=0 // pred_check
    _
  $region15: #{resbl_forward.1} parent=0 // pred_check_branch
    %1089 = sbr.rel (0) target = $region17
  $region16: #{resbl_forward.1} parent=0 // pred_region
    _
  $region17: #{resbl_forward.1} parent=0 // pred_fallthru
    _
  // Predicated region
  $region18: #{resbl_forward.1} parent=0 // pred_check
    _
  $region19: #{resbl_forward.1} parent=0 // pred_check_branch
    %1091 = sbr.rel (0) target = $region21
  $region20: #{resbl_forward.1} parent=0 // pred_region
    _
  $region21: #{resbl_forward.1} parent=0 // pred_fallthru
    _

</llo_original>
